<compile_context>
chip_gen: v7x
topology: tpu7x:2x2x1
jax: 0.10.0
libtpu: 0.0.40
codegen_flags: <defaults>
</compile_context>

<pallas_src>
import math
import functools

import jax
import jax.numpy as jnp
from jax.experimental import pallas as pl
from jax.experimental.pallas import tpu as pltpu


def _round_up(a, b):
    return ((a + b - 1) // b) * b


# ---------------------------------------------------------------------------
# Kernel 1: fused  relu(fc(x))  +  per-capsule L2 normalize   (row-tiled)
# Rows >= n_valid are forced to exactly zero so that row index n acts as the
# "catch zero" row used by neighbor_id == n.
# ---------------------------------------------------------------------------
def _fc_norm_kernel(x_ref, w_ref, b_ref, out_ref, *, channel, k_dim, n_valid, tile):
    t = pl.program_id(0)
    x = x_ref[...]                                                  # (tile, in_dim)
    y = jnp.dot(x, w_ref[...], preferred_element_type=jnp.float32) + b_ref[...]
    y = jnp.maximum(y, 0.0)                                         # F.relu
    yc = y.reshape(tile, channel, k_dim)
    ss = jnp.sum(yc * yc, axis=-1, keepdims=True)
    yc = yc * jax.lax.rsqrt(jnp.maximum(ss, 1e-24))                 # == x / max(||x||, 1e-12)
    y = yc.reshape(tile, channel * k_dim)
    rows = t * tile + jax.lax.broadcasted_iota(jnp.int32, y.shape, 0)
    out_ref[...] = jnp.where(rows < n_valid, y, 0.0)


# Same as above but without the linear layer (module built without `fc`).
def _norm_kernel(x_ref, out_ref, *, channel, k_dim, n_valid, tile):
    t = pl.program_id(0)
    y = x_ref[...]                                                  # (tile, d)
    yc = y.reshape(tile, channel, k_dim)
    ss = jnp.sum(yc * yc, axis=-1, keepdims=True)
    yc = yc * jax.lax.rsqrt(jnp.maximum(ss, 1e-24))
    y = yc.reshape(tile, channel * k_dim)
    rows = t * tile + jax.lax.broadcasted_iota(jnp.int32, y.shape, 0)
    out_ref[...] = jnp.where(rows < n_valid, y, 0.0)


# ---------------------------------------------------------------------------
# Kernel 2: in-kernel neighbor gather (DMA) + iterative routing
# ---------------------------------------------------------------------------
def _routing_kernel(ids_ref, x_ref, xz_hbm, out_ref, nb_buf, sem,
                    *, m, channel, k_dim, rout_it, tau, tile):
    # ids_ref : SMEM (n_pad*m,) int32  -- scalar-prefetched neighbor ids
    # x_ref   : VMEM (tile, d)         -- this tile's normalized capsules (lane-dense)
    # xz_hbm  : ANY  (n_pad, d)        -- full normalized capsules; rows >= n are zero
    # out_ref : VMEM (tile, d)
    # nb_buf  : VMEM (tile, m, d) scratch; sem: DMA semaphore (1,)
    d = channel * k_dim
    base = pl.program_id(0) * (tile * m)

    # ---- gather: issue all per-row DMAs, then wait for all of them ----
    @pl.loop(0, tile)
    def _start_gather(i):
        row = base + i * m
        for j in range(m):                       # m is small & static -> unrolled
            idx = ids_ref[row + j]
            pltpu.make_async_copy(xz_hbm.at[pl.ds(idx, 1)],
                                  nb_buf.at[i, pl.ds(j, 1)],
                                  sem.at[0]).start()

    @pl.loop(0, tile * m)
    def _wait_gather(_i):
        # shape-matched dummy descriptor: only sem + shape matter for the wait
        pltpu.make_async_copy(xz_hbm.at[pl.ds(0, 1)],
                              nb_buf.at[0, pl.ds(0, 1)],
                              sem.at[0]).wait()

    # ---- routing iterations on lane-dense (tile, d) slices ----
    x = x_ref[...]                               # (tile, d)
    inv_tau = 1.0 / tau
    u = x
    for it in range(rout_it):
        acc = jnp.zeros_like(x)
        for j in range(m):
            nbj = nb_buf[:, j, :]                # (tile, d), lane-dense slice
            prod = (u * nbj).reshape(tile, channel, k_dim)
            a = jnp.sum(prod, axis=-1) * inv_tau                 # (tile, channel)
            a = a - jnp.max(a, axis=-1, keepdims=True)
            e = jnp.exp(a)
            p = e / jnp.sum(e, axis=-1, keepdims=True)           # softmax over channel
            w_nb = p[:, :, None] * nbj.reshape(tile, channel, k_dim)
            acc = acc + w_nb.reshape(tile, d)
        u = acc + x
        if it < rout_it - 1:
            uc = u.reshape(tile, channel, k_dim)
            ss = jnp.sum(uc * uc, axis=-1, keepdims=True)
            uc = uc * jax.lax.rsqrt(jnp.maximum(ss, 1e-24))      # F.normalize(dim=-1)
            u = uc.reshape(tile, d)
    out_ref[...] = u


# ---------------------------------------------------------------------------
# Module wrapper
# ---------------------------------------------------------------------------
class RoutingPallas:
    def __init__(self, k_dim, out_caps, in_caps, rout_it, tau,
                 every_linear=True, key=None):
        self.channel, self.k_dim = out_caps, k_dim
        self.d = out_caps * k_dim
        self.rout_it = int(rout_it)
        self.tau = float(tau)
        self.has_fc = in_caps is not None and (in_caps != out_caps or every_linear)
        if self.has_fc:
            if key is None:
                key = jax.random.PRNGKey(0)
            in_dim = in_caps * k_dim
            stdv = 1.0 / math.sqrt(float(in_dim))
            kw, kb = jax.random.split(key)
            # stored transposed as (in_dim, out_dim) so the kernel computes x @ W
            self.w = jax.random.uniform(kw, (in_dim, self.d),
                                        minval=-stdv, maxval=stdv, dtype=jnp.float32)
            self.b = jax.random.uniform(kb, (1, self.d),
                                        minval=-stdv, maxval=stdv, dtype=jnp.float32)

    def __call__(self, x, neighbor_id):
        n = x.shape[0]
        m = neighbor_id.shape[0] // n
        channel, k_dim, d = self.channel, self.k_dim, self.d

        # Row tile: multiple of 8, capped to keep vreg pressure moderate for the
        # d=channel*k_dim lane width.  n_pad >= n+1 so row n is the zero row.
        tile = min(128, _round_up(n + 1, 8))
        n_pad = _round_up(n + 1, tile)
        grid = (n_pad // tile,)
        cparams = pltpu.CompilerParams(
            dimension_semantics=("parallel",),
            vmem_limit_bytes=32 * 1024 * 1024,
        )

        x_p = jnp.pad(x.astype(jnp.float32), ((0, n_pad - n), (0, 0)))

        if self.has_fc:
            in_dim = x.shape[1]
            x_norm = pl.pallas_call(
                functools.partial(_fc_norm_kernel, channel=channel, k_dim=k_dim,
                                  n_valid=n, tile=tile),
                out_shape=jax.ShapeDtypeStruct((n_pad, d), jnp.float32),
                grid=grid,
                in_specs=[
                    pl.BlockSpec((tile, in_dim), lambda i: (i, 0)),
                    pl.BlockSpec((in_dim, d), lambda i: (0, 0)),   # W stays resident
                    pl.BlockSpec((1, d), lambda i: (0, 0)),
                ],
                out_specs=pl.BlockSpec((tile, d), lambda i: (i, 0)),
                compiler_params=cparams,
            )(x_p, self.w, self.b)
        else:
            x_norm = pl.pallas_call(
                functools.partial(_norm_kernel, channel=channel, k_dim=k_dim,
                                  n_valid=n, tile=tile),
                out_shape=jax.ShapeDtypeStruct((n_pad, d), jnp.float32),
                grid=grid,
                in_specs=[pl.BlockSpec((tile, d), lambda i: (i, 0))],
                out_specs=pl.BlockSpec((tile, d), lambda i: (i, 0)),
                compiler_params=cparams,
            )(x_p)

        # Neighbor ids padded to n_pad rows; padded nodes point at the zero row n.
        ids = neighbor_id.reshape(n, m).astype(jnp.int32)
        ids_p = jnp.pad(ids, ((0, n_pad - n), (0, 0)), constant_values=n).reshape(-1)

        out_p = pl.pallas_call(
            functools.partial(_routing_kernel, m=m, channel=channel, k_dim=k_dim,
                              rout_it=self.rout_it, tau=self.tau, tile=tile),
            grid_spec=pltpu.PrefetchScalarGridSpec(
                num_scalar_prefetch=1,
                grid=grid,
                in_specs=[
                    pl.BlockSpec((tile, d), lambda i, ids_ref: (i, 0)),  # row tile
                    pl.BlockSpec(memory_space=pl.ANY),                   # gather source
                ],
                out_specs=pl.BlockSpec((tile, d), lambda i, ids_ref: (i, 0)),
                scratch_shapes=[
                    pltpu.VMEM((tile, m, d), jnp.float32),
                    pltpu.SemaphoreType.DMA((1,)),
                ],
            ),
            out_shape=jax.ShapeDtypeStruct((n_pad, d), jnp.float32),
            compiler_params=cparams,
        )(ids_p, x_norm, x_norm)

        return out_p[:n]


# ---------------------------------------------------------------------------
# Pure-JAX reference (mirrors the PyTorch forward exactly)
# ---------------------------------------------------------------------------
def _reference(mod: RoutingPallas, x, neighbor_id):
    n = x.shape[0]
    m = neighbor_id.shape[0] // n
    c, k, d = mod.channel, mod.k_dim, mod.d
    h = x
    if mod.has_fc:
        h = jnp.maximum(h @ mod.w + mod.b, 0.0)
    hr = h.reshape(n, c, k)
    hr = hr / jnp.maximum(jnp.linalg.norm(hr, axis=-1, keepdims=True), 1e-12)
    h = hr.reshape(n, d)
    z = jnp.concatenate([h, jnp.zeros((1, d), jnp.float32)], axis=0)
    nb = z[neighbor_id].reshape(n, m, c, k)
    u = h.reshape(n, c, k)
    for it in range(mod.rout_it):
        p = jnp.sum(u[:, None] * nb, axis=-1)
        p = jax.nn.softmax(p / mod.tau, axis=-1)
        u = jnp.sum(p[..., None] * nb, axis=1) + h.reshape(n, c, k)
        if it < mod.rout_it - 1:
            u = u / jnp.maximum(jnp.linalg.norm(u, axis=-1, keepdims=True), 1e-12)
    return u.reshape(n, d)


if __name__ == "__main__":
    key = jax.random.PRNGKey(0)
    k_param, k_x, k_nb = jax.random.split(key, 3)

    # small shapes consistent with the module
    n, in_caps, out_caps, k_dim, m = 8, 4, 4, 8, 5
    rout_it, tau = 3, 1.0

    mod = RoutingPallas(k_dim=k_dim, out_caps=out_caps, in_caps=in_caps,
                        rout_it=rout_it, tau=tau, every_linear=True, key=k_param)

    x = jax.random.normal(k_x, (n, in_caps * k_dim), dtype=jnp.float32)
    # neighbor ids in [0, n] inclusive; index n selects the zero-padding row
    neighbor_id = jax.random.randint(k_nb, (n * m,), 0, n + 1, dtype=jnp.int32)

    out = jax.block_until_ready(mod(x, neighbor_id))
    ref = jax.block_until_ready(_reference(mod, x, neighbor_id))

    assert out.shape == (n, out_caps * k_dim)
    assert jnp.allclose(out, ref, atol=1e-4, rtol=1e-4), "mismatch vs reference"

    print("KERNEL_OK")
</pallas_src>

<mosaic_0001>
module attributes {stable_mosaic.version = 11 : i64} {
  func.func @_fc_norm_kernel(%arg0: i32, %arg1: memref<16x32xf32, #tpu.memory_space<vmem>>, %arg2: memref<32x32xf32, #tpu.memory_space<vmem>>, %arg3: memref<1x32xf32, #tpu.memory_space<vmem>>, %arg4: memref<16x32xf32, #tpu.memory_space<vmem>>) attributes {dimension_semantics = [#tpu.dimension_semantics<parallel>], iteration_bounds = array<i64: 1>, scalar_prefetch = 0 : i64, scratch_operands = 0 : i64, tpu.core_type = #tpu.core_type<tc>, window_params = [{transform_indices = @transform_0, window_bounds = array<i64: 16, 32>}, {pipeline_mode = #tpu.pipeline_mode<synchronous>, transform_indices = @transform_1, window_bounds = array<i64: 32, 32>}, {pipeline_mode = #tpu.pipeline_mode<synchronous>, transform_indices = @transform_2, window_bounds = array<i64: 1, 32>}, {transform_indices = @transform_3, window_bounds = array<i64: 16, 32>}]} {
    %c0 = arith.constant 0 : index
    %c0_0 = arith.constant 0 : index
    %0 = vector.load %arg1[%c0, %c0_0] : memref<16x32xf32, #tpu.memory_space<vmem>>, vector<16x32xf32>
    %c0_1 = arith.constant 0 : index
    %c0_2 = arith.constant 0 : index
    %1 = vector.load %arg2[%c0_1, %c0_2] : memref<32x32xf32, #tpu.memory_space<vmem>>, vector<32x32xf32>
    %cst = arith.constant dense<0.000000e+00> : vector<16x32xf32>
    %2 = tpu.matmul %0, %1, %cst {dimension_numbers = #tpu.dot_dimension_numbers<[1], [0], [0], [1], [0, 0, 1, 1], [], []>} : vector<16x32xf32>, vector<32x32xf32>, vector<16x32xf32> -> vector<16x32xf32>
    %c0_3 = arith.constant 0 : index
    %c0_4 = arith.constant 0 : index
    %3 = vector.load %arg3[%c0_3, %c0_4] : memref<1x32xf32, #tpu.memory_space<vmem>>, vector<1x32xf32>
    %4 = vector.broadcast %3 : vector<1x32xf32> to vector<16x32xf32>
    %5 = arith.addf %2, %4 : vector<16x32xf32>
    %cst_5 = arith.constant 0.000000e+00 : f32
    %6 = vector.broadcast %cst_5 : f32 to vector<16x32xf32>
    %7 = arith.maximumf %5, %6 : vector<16x32xf32>
    %8 = vector.shape_cast %7 : vector<16x32xf32> to vector<16x4x8xf32>
    %9 = arith.mulf %8, %8 : vector<16x4x8xf32>
    %cst_6 = arith.constant dense<0.000000e+00> : vector<16x4xf32>
    %10 = vector.multi_reduction <add>, %9, %cst_6 [2] : vector<16x4x8xf32> to vector<16x4xf32>
    %11 = vector.shape_cast %10 : vector<16x4xf32> to vector<16x4x1xf32>
    %cst_7 = arith.constant 1.000000e-24 : f32
    %12 = vector.broadcast %cst_7 : f32 to vector<16x4x1xf32>
    %13 = arith.maximumf %11, %12 : vector<16x4x1xf32>
    %14 = math.rsqrt %13 : vector<16x4x1xf32>
    %15 = vector.broadcast %14 : vector<16x4x1xf32> to vector<16x4x8xf32>
    %16 = arith.mulf %8, %15 : vector<16x4x8xf32>
    %17 = vector.shape_cast %16 : vector<16x4x8xf32> to vector<16x32xf32>
    %c16_i32 = arith.constant 16 : i32
    %18 = arith.muli %arg0, %c16_i32 : i32
    %19 = tpu.iota {dimensions = array<i32: 0>} : vector<16x32xi32>
    %20 = vector.broadcast %18 : i32 to vector<16x32xi32>
    %21 = arith.addi %20, %19 : vector<16x32xi32>
    %c8_i32 = arith.constant 8 : i32
    %22 = vector.broadcast %c8_i32 : i32 to vector<16x32xi32>
    %23 = arith.cmpi slt, %21, %22 : vector<16x32xi32>
    %cst_8 = arith.constant 0.000000e+00 : f32
    %24 = vector.broadcast %cst_8 : f32 to vector<16x32xf32>
    %25 = arith.select %23, %17, %24 : vector<16x32xi1>, vector<16x32xf32>
    %c0_9 = arith.constant 0 : index
    %c0_10 = arith.constant 0 : index
    %26 = vector.load %arg4[%c0_9, %c0_10] : memref<16x32xf32, #tpu.memory_space<vmem>>, vector<16x32xf32>
    tpu.vector_store %arg4[%c0_9, %c0_10], %25 {strides = array<i32>} : memref<16x32xf32, #tpu.memory_space<vmem>>, vector<16x32xf32>,
    return
  }
  func.func @transform_0(%arg0: i32) -> (i32, i32) {
    %c0_i32 = arith.constant 0 : i32
    %c0_i32_0 = arith.constant 0 : i32
    return %arg0, %c0_i32 : i32, i32
  }
  func.func @transform_1(%arg0: i32) -> (i32, i32) {
    %c0_i32 = arith.constant 0 : i32
    %c0_i32_0 = arith.constant 0 : i32
    %c0_i32_1 = arith.constant 0 : i32
    return %c0_i32, %c0_i32_0 : i32, i32
  }
  func.func @transform_2(%arg0: i32) -> (i32, i32) {
    %c0_i32 = arith.constant 0 : i32
    %c0_i32_0 = arith.constant 0 : i32
    %c0_i32_1 = arith.constant 0 : i32
    return %c0_i32, %c0_i32_0 : i32, i32
  }
  func.func @transform_3(%arg0: i32) -> (i32, i32) {
    %c0_i32 = arith.constant 0 : i32
    %c0_i32_0 = arith.constant 0 : i32
    return %arg0, %c0_i32 : i32, i32
  }
}

</mosaic_0001>

<llo_original>
// kernel: tpu_custom_call.1
$region0: #{tpu_custom_call.1}
  #allocation0 [shape = 'u32[]', space=smem, size = 0x4, offset = 0x4, fixed_abs, tag = 'smem constant byte address 0x4 - core index']
  #allocation1 [shape = 'u32[144,128]{1,0:T(1,128)}', space=vmem, size = 0x12000, scoped, tag = 'internal scratch']
  %s0 = inlined_call_operand.hbm [shape: f32[16,32], index: 0, kind: input, shape index: {}]
  %s1 = inlined_call_operand.hbm [shape: f32[32,32], index: 1, kind: input, shape index: {}]
  %s2 = inlined_call_operand.vmem [shape: f32[1,32], index: 2, kind: input, shape index: {}]
  %s3 = inlined_call_operand.hbm [shape: f32[16,32], index: 3, kind: output, shape index: {}]
  %s4 = sld [smem:[#allocation0]]
  $region30: #{tpu_custom_call.1} parent=0
    _
  %s6 = ssub.s32 1, %s4
  %s7 = scalar_select 0, %s6, %s4
  $region1: #{tpu_custom_call.1} parent=0
    #allocation2 [shape = 'u8[8192]{0}', space=vmem, size = 0x2000, scoped, tag = 'input window, operand 0, single buffered']
    #allocation3 [shape = 's32[1]{0}', space=sflag, size = 0x4, scoped, tag = 'scoped memory for tpu_custom_call.1']
    #allocation4 [shape = 's32[1]{0}', space=sflag, size = 0x4, scoped, tag = 'scoped memory for tpu_custom_call.1']
    #allocation5 [shape = 'u8[16384]{0}', space=vmem, size = 0x4000, scoped, tag = 'input window, operand 1, single buffered']
    #allocation6 [shape = 's32[1]{0}', space=sflag, size = 0x4, scoped, tag = 'scoped memory for tpu_custom_call.1']
    #allocation7 [shape = 'u8[8192]{0}', space=vmem, size = 0x2000, scoped, tag = 'output window, operand 0, single buffered']
    %8 = vsyncpa [#allocation3], 0
    %9 = vsyncpa [#allocation6], 0
    %10 = vsyncpa [#allocation4], 0
    // Predicated region
    $region2: #{tpu_custom_call.1} parent=1 // pred_check
      _
    $region3: #{tpu_custom_call.1} parent=1 // pred_check_branch
      %12 = sbr.rel (0) target = $region5
    $region4: #{tpu_custom_call.1} parent=1 // pred_region
      %s14 = ssub.s32 256, 256
      %15 = vsyncadd [#allocation3], %s14
      %s16 = sshll.u32 [#allocation2], 4
      %s17 = int_to_ptr.vmem [resolvable:$true] %s16
      %22 = dma.hbm_to_vmem [thread:$0]  %s0, 256, %s17, [#allocation3], 128, 128, 8
    $region5: #{tpu_custom_call.1} parent=1 // pred_fallthru
      _
    // Predicated region
    $region6: #{tpu_custom_call.1} parent=1 // pred_check
      _
    $region7: #{tpu_custom_call.1} parent=1 // pred_check_branch
      %24 = sbr.rel (0) target = $region9
    $region8: #{tpu_custom_call.1} parent=1 // pred_region
      %s26 = ssub.s32 512, 512
      %27 = vsyncadd [#allocation6], %s26
      %s28 = sshll.u32 [#allocation5], 4
      %s29 = int_to_ptr.vmem [resolvable:$true] %s28
      %34 = dma.hbm_to_vmem [thread:$0]  %s1, 512, %s29, [#allocation6], 128, 128, 8
    $region9: #{tpu_custom_call.1} parent=1 // pred_fallthru
      _
    // Predicated region
    $region10: #{tpu_custom_call.1} parent=1 // pred_check
      _
    $region11: #{tpu_custom_call.1} parent=1 // pred_check_branch
      %36 = sbr.rel (0) target = $region13
    $region12: #{tpu_custom_call.1} parent=1 // pred_region
      _
    $region13: #{tpu_custom_call.1} parent=1 // pred_fallthru
      _
    // Predicated region
    $region14: #{tpu_custom_call.1} parent=1 // pred_check
      _
    $region15: #{tpu_custom_call.1} parent=1 // pred_check_branch
      %38 = sbr.rel (0) target = $region17
    $region16: #{tpu_custom_call.1} parent=1 // pred_region
      %39 = dma.done [#allocation3], 256
    $region17: #{tpu_custom_call.1} parent=1 // pred_fallthru
      _
    // Predicated region
    $region18: #{tpu_custom_call.1} parent=1 // pred_check
      _
    $region19: #{tpu_custom_call.1} parent=1 // pred_check_branch
      %41 = sbr.rel (0) target = $region21
    $region20: #{tpu_custom_call.1} parent=1 // pred_region
      %42 = dma.done [#allocation6], 512
    $region21: #{tpu_custom_call.1} parent=1 // pred_fallthru
      _
    %v43 = vld [vmem:[#allocation2] sm:$0xff]
    %v44 = vld [vmem:[#allocation2 + $0x8] sm:$0xff]
    %v45 = vld [vmem:[#allocation5] sm:$0xff]
    %v46 = vld [vmem:[#allocation5 + $0x8] sm:$0xff]
    %v47 = vld [vmem:[#allocation5 + $0x10] sm:$0xff]
    %v48 = vld [vmem:[#allocation5 + $0x18] sm:$0xff]
    %v49 = vld [vmem:[%s2] sm:$0x1]
    %v51 = vlaneseq
    %v52 = vshrl.u32 %v51, 7
    %v53 = vsub.s32 0, %v52
    %v54 = vrot.slane %v49, %v53
    %vm56 = vcmask 261120
    %v58 = vsel %vm56, %v43, 0
    %v61 = vsel %vm56, %v44, 0
    %63 = vmatprep.subr.mxu0 0.0
    %64 = vmatpush1.msra.mxu0 %v45
    %65 = vmatprep.subr.mxu0 0.0
    %66 = vmatpush1.msra.mxu0 %v46
    %67 = vmatprep.subr.mxu0 0.0
    %68 = vmatpush1.msra.mxu0 %v47
    %69 = vmatprep.subr.mxu0 0.0
    %70 = vmatpush1.msra.mxu0 %v48
    %71 = vmatprep.subr.mxu0 0.0
    %72 = vmatpush1.msra.mxu0 0.0
    %73 = vmatprep.subr.mxu0 0.0
    %74 = vmatpush1.msra.mxu0 0.0
    %75 = vmatprep.subr.mxu0 0.0
    %76 = vmatpush1.msra.mxu0 0.0
    %77 = vmatprep.subr.mxu0 0.0
    %78 = vmatpush1.msra.mxu0 0.0
    %79 = vmatprep.subr.mxu0 0.0
    %80 = vmatpush1.msra.mxu0 0.0
    %81 = vmatprep.subr.mxu0 0.0
    %82 = vmatpush1.msra.mxu0 0.0
    %83 = vmatprep.subr.mxu0 0.0
    %84 = vmatpush1.msra.mxu0 0.0
    %85 = vmatprep.subr.mxu0 0.0
    %86 = vmatpush1.msra.mxu0 0.0
    %87 = vmatprep.subr.mxu0 0.0
    %88 = vmatpush1.msra.mxu0 0.0
    %89 = vmatprep.subr.mxu0 0.0
    %90 = vmatpush1.msra.mxu0 0.0
    %91 = vmatprep.subr.mxu0 0.0
    %92 = vmatpush1.msra.mxu0 0.0
    %93 = vmatprep.subr.mxu0 0.0
    %94 = vmatpush1.msra.mxu0 0.0
    %95 = vmatprep.subr.mxu0 0.0
    %96 = vmatpush1.msra.mxu0 0.0
    %97 = vmatprep.subr.mxu0 0.0
    %98 = vmatpush1.msra.mxu0 0.0
    %99 = vmatprep.subr.mxu0 0.0
    %100 = vmatpush1.msra.mxu0 0.0
    %101 = vmatprep.subr.mxu0 0.0
    %102 = vmatpush1.msra.mxu0 0.0
    %103 = vmatprep.subr.mxu0 0.0
    %104 = vmatpush1.msra.mxu0 0.0
    %105 = vmatprep.subr.mxu0 0.0
    %106 = vmatpush1.msra.mxu0 0.0
    %107 = vmatprep.subr.mxu0 0.0
    %108 = vmatpush1.msra.mxu0 0.0
    %109 = vmatprep.subr.mxu0 0.0
    %110 = vmatpush1.msra.mxu0 0.0
    %111 = vmatprep.subr.mxu0 0.0
    %112 = vmatpush1.msra.mxu0 0.0
    %113 = vmatprep.subr.mxu0 0.0
    %114 = vmatpush1.msra.mxu0 0.0
    %115 = vmatprep.subr.mxu0 0.0
    %116 = vmatpush1.msra.mxu0 0.0
    %117 = vmatprep.subr.mxu0 0.0
    %118 = vmatpush1.msra.mxu0 0.0
    %119 = vmatprep.subr.mxu0 0.0
    %120 = vmatpush1.msra.mxu0 0.0
    %121 = vmatprep.subr.mxu0 0.0
    %122 = vmatpush1.msra.mxu0 0.0
    %123 = vmatprep.subr.mxu0 0.0
    %124 = vmatpush1.msra.mxu0 0.0
    %125 = vmatprep.subr.mxu0 0.0
    %126 = vmatpush1.msra.mxu0 0.0
    %127 = vmatprep.mubr.f32.mxu0 0.0
    %128 = vmatmul.mubr.f32.gmra.mrb[0].mxu0 %v58
    %v129 = vpop.f32.mrb[0].mxu0
    %v130 = vadd.f32 %v54, %v129
    %v131 = vpop.f32.mrb[0].mxu0
    %132 = vmatprep.mubr.f32.mxu0 0.0
    %133 = vmatmul.mubr.f32.gmra.mrb[0].mxu0 %v61
    %v134 = vpop.f32.mrb[0].mxu0
    %v135 = vadd.f32 %v54, %v134
    %v136 = vpop.f32.mrb[0].mxu0
    %137 = vdwg.mxu0
    %v138 = vmax.f32 %v130, 0.0
    %v139 = vmax.f32 %v135, 0.0
    %142 = vrot.lane.b32.xlu0 %v138, 120
    %v143 = vpop.permute.xlu0 %142
    %144 = vrot.lane.b32.xlu0 %v139, 120
    %v145 = vpop.permute.xlu0 %144
    %148 = vrot.lane.b32.xlu0 %v138, 112
    %v149 = vpop.permute.xlu0 %148
    %150 = vrot.lane.b32.xlu0 %v139, 112
    %v151 = vpop.permute.xlu0 %150
    %154 = vrot.lane.b32.xlu0 %v138, 104
    %v155 = vpop.permute.xlu0 %154
    %156 = vrot.lane.b32.xlu0 %v139, 104
    %v157 = vpop.permute.xlu0 %156
    %v160 = vcombine.low %v138, %v149
    %v161 = vcombine.high %v138, %v149
    %v163 = vunpack.c.l.s4 1983009808
    %v164 = vunpack.c.0.s8 %v163
    %v165 = vlaneseq
    %v166 = vshrl.u32 %v165, 7
    %v167 = vsub.s32 %v164, %v166
    %v168 = vrot.slane %v160, %v167
    %v170 = vunpack.c.l.s4 1983009808
    %v171 = vunpack.c.0.s8 %v170
    %v172 = vlaneseq
    %v173 = vshrl.u32 %v172, 7
    %v174 = vsub.s32 %v171, %v173
    %v175 = vrot.slane %v161, %v174
    %v176 = vcombine.low %v143, %v155
    %v177 = vcombine.high %v143, %v155
    %v179 = vunpack.c.l.s4 1983009808
    %v180 = vunpack.c.0.s8 %v179
    %v181 = vlaneseq
    %v182 = vshrl.u32 %v181, 7
    %v183 = vsub.s32 %v180, %v182
    %v184 = vrot.slane %v176, %v183
    %v186 = vunpack.c.l.s4 1983009808
    %v187 = vunpack.c.0.s8 %v186
    %v188 = vlaneseq
    %v189 = vshrl.u32 %v188, 7
    %v190 = vsub.s32 %v187, %v189
    %v191 = vrot.slane %v177, %v190
    %v192 = vcombine.low %v168, %v184
    %v193 = vcombine.high %v168, %v184
    %v195 = vunpack.c.l.s4 1934713408
    %v196 = vunpack.c.0.s8 %v195
    %v197 = vlaneseq
    %v198 = vshrl.u32 %v197, 7
    %v199 = vsub.s32 %v196, %v198
    %v200 = vrot.slane %v192, %v199
    %v202 = vunpack.c.l.s4 1934713408
    %v203 = vunpack.c.0.s8 %v202
    %v204 = vlaneseq
    %v205 = vshrl.u32 %v204, 7
    %v206 = vsub.s32 %v203, %v205
    %v207 = vrot.slane %v193, %v206
    %v208 = vcombine.low %v175, %v191
    %v209 = vcombine.high %v175, %v191
    %v211 = vunpack.c.l.s4 1934713408
    %v212 = vunpack.c.0.s8 %v211
    %v213 = vlaneseq
    %v214 = vshrl.u32 %v213, 7
    %v215 = vsub.s32 %v212, %v214
    %v216 = vrot.slane %v208, %v215
    %v218 = vunpack.c.l.s4 1934713408
    %v219 = vunpack.c.0.s8 %v218
    %v220 = vlaneseq
    %v221 = vshrl.u32 %v220, 7
    %v222 = vsub.s32 %v219, %v221
    %v223 = vrot.slane %v209, %v222
    %v224 = vcombine.high %v200, 0.0
    %v225 = vcombine.high %v207, 0.0
    %v226 = vcombine.high %v216, 0.0
    %v227 = vcombine.high %v223, 0.0
    %v228 = vcombine.low %v139, %v151
    %v229 = vcombine.high %v139, %v151
    %v231 = vunpack.c.l.s4 1983009808
    %v232 = vunpack.c.0.s8 %v231
    %v233 = vlaneseq
    %v234 = vshrl.u32 %v233, 7
    %v235 = vsub.s32 %v232, %v234
    %v236 = vrot.slane %v228, %v235
    %v238 = vunpack.c.l.s4 1983009808
    %v239 = vunpack.c.0.s8 %v238
    %v240 = vlaneseq
    %v241 = vshrl.u32 %v240, 7
    %v242 = vsub.s32 %v239, %v241
    %v243 = vrot.slane %v229, %v242
    %v244 = vcombine.low %v145, %v157
    %v245 = vcombine.high %v145, %v157
    %v247 = vunpack.c.l.s4 1983009808
    %v248 = vunpack.c.0.s8 %v247
    %v249 = vlaneseq
    %v250 = vshrl.u32 %v249, 7
    %v251 = vsub.s32 %v248, %v250
    %v252 = vrot.slane %v244, %v251
    %v254 = vunpack.c.l.s4 1983009808
    %v255 = vunpack.c.0.s8 %v254
    %v256 = vlaneseq
    %v257 = vshrl.u32 %v256, 7
    %v258 = vsub.s32 %v255, %v257
    %v259 = vrot.slane %v245, %v258
    %v260 = vcombine.low %v236, %v252
    %v261 = vcombine.high %v236, %v252
    %v263 = vunpack.c.l.s4 1934713408
    %v264 = vunpack.c.0.s8 %v263
    %v265 = vlaneseq
    %v266 = vshrl.u32 %v265, 7
    %v267 = vsub.s32 %v264, %v266
    %v268 = vrot.slane %v260, %v267
    %v270 = vunpack.c.l.s4 1934713408
    %v271 = vunpack.c.0.s8 %v270
    %v272 = vlaneseq
    %v273 = vshrl.u32 %v272, 7
    %v274 = vsub.s32 %v271, %v273
    %v275 = vrot.slane %v261, %v274
    %v276 = vcombine.low %v243, %v259
    %v277 = vcombine.high %v243, %v259
    %v279 = vunpack.c.l.s4 1934713408
    %v280 = vunpack.c.0.s8 %v279
    %v281 = vlaneseq
    %v282 = vshrl.u32 %v281, 7
    %v283 = vsub.s32 %v280, %v282
    %v284 = vrot.slane %v276, %v283
    %v286 = vunpack.c.l.s4 1934713408
    %v287 = vunpack.c.0.s8 %v286
    %v288 = vlaneseq
    %v289 = vshrl.u32 %v288, 7
    %v290 = vsub.s32 %v287, %v289
    %v291 = vrot.slane %v277, %v290
    %v292 = vcombine.high %v268, 0.0
    %v293 = vcombine.high %v275, 0.0
    %v294 = vcombine.high %v284, 0.0
    %v295 = vcombine.high %v291, 0.0
    %v296 = vmul.f32 %v200, %v200
    %v297 = vmul.f32 %v224, %v224
    %v298 = vmul.f32 %v207, %v207
    %v299 = vmul.f32 %v225, %v225
    %v300 = vmul.f32 %v216, %v216
    %v301 = vmul.f32 %v226, %v226
    %v302 = vmul.f32 %v223, %v223
    %v303 = vmul.f32 %v227, %v227
    %v304 = vmul.f32 %v268, %v268
    %v305 = vmul.f32 %v292, %v292
    %v306 = vmul.f32 %v275, %v275
    %v307 = vmul.f32 %v293, %v293
    %v308 = vmul.f32 %v284, %v284
    %v309 = vmul.f32 %v294, %v294
    %v310 = vmul.f32 %v291, %v291
    %v311 = vmul.f32 %v295, %v295
    %vm312 = vcmask 60416
    %v313 = vsel %vm312, %v296, 0.0
    %314 = vadd.xlane.f32.xlu0 %v313
    %v315 = vpop.xlane.xlu0 %314
    %v316 = vsel %vm312, %v297, 0.0
    %317 = vadd.xlane.f32.xlu0 %v316
    %v318 = vpop.xlane.xlu0 %317
    %v319 = vsel %vm312, %v298, 0.0
    %320 = vadd.xlane.f32.xlu0 %v319
    %v321 = vpop.xlane.xlu0 %320
    %v322 = vsel %vm312, %v299, 0.0
    %323 = vadd.xlane.f32.xlu0 %v322
    %v324 = vpop.xlane.xlu0 %323
    %v325 = vsel %vm312, %v300, 0.0
    %326 = vadd.xlane.f32.xlu0 %v325
    %v327 = vpop.xlane.xlu0 %326
    %v328 = vsel %vm312, %v301, 0.0
    %329 = vadd.xlane.f32.xlu0 %v328
    %v330 = vpop.xlane.xlu0 %329
    %v331 = vsel %vm312, %v302, 0.0
    %332 = vadd.xlane.f32.xlu0 %v331
    %v333 = vpop.xlane.xlu0 %332
    %v334 = vsel %vm312, %v303, 0.0
    %335 = vadd.xlane.f32.xlu0 %v334
    %v336 = vpop.xlane.xlu0 %335
    %v337 = vsel %vm312, %v304, 0.0
    %338 = vadd.xlane.f32.xlu0 %v337
    %v339 = vpop.xlane.xlu0 %338
    %v340 = vsel %vm312, %v305, 0.0
    %341 = vadd.xlane.f32.xlu0 %v340
    %v342 = vpop.xlane.xlu0 %341
    %v343 = vsel %vm312, %v306, 0.0
    %344 = vadd.xlane.f32.xlu0 %v343
    %v345 = vpop.xlane.xlu0 %344
    %v346 = vsel %vm312, %v307, 0.0
    %347 = vadd.xlane.f32.xlu0 %v346
    %v348 = vpop.xlane.xlu0 %347
    %v349 = vsel %vm312, %v308, 0.0
    %350 = vadd.xlane.f32.xlu0 %v349
    %v351 = vpop.xlane.xlu0 %350
    %v352 = vsel %vm312, %v309, 0.0
    %353 = vadd.xlane.f32.xlu0 %v352
    %v354 = vpop.xlane.xlu0 %353
    %v355 = vsel %vm312, %v310, 0.0
    %356 = vadd.xlane.f32.xlu0 %v355
    %v357 = vpop.xlane.xlu0 %356
    %v358 = vsel %vm312, %v311, 0.0
    %359 = vadd.xlane.f32.xlu0 %v358
    %v360 = vpop.xlane.xlu0 %359
    %v361 = vmax.f32 %v315, 1e-24
    %v362 = vmax.f32 %v318, 1e-24
    %v363 = vmax.f32 %v321, 1e-24
    %v364 = vmax.f32 %v324, 1e-24
    %v365 = vmax.f32 %v327, 1e-24
    %v366 = vmax.f32 %v330, 1e-24
    %v367 = vmax.f32 %v333, 1e-24
    %v368 = vmax.f32 %v336, 1e-24
    %v369 = vmax.f32 %v339, 1e-24
    %v370 = vmax.f32 %v342, 1e-24
    %v371 = vmax.f32 %v345, 1e-24
    %v372 = vmax.f32 %v348, 1e-24
    %v373 = vmax.f32 %v351, 1e-24
    %v374 = vmax.f32 %v354, 1e-24
    %v375 = vmax.f32 %v357, 1e-24
    %v376 = vmax.f32 %v360, 1e-24
    %v377 = vrsqrt.pop %v361
    %v378 = vrsqrt.pop %v362
    %v379 = vrsqrt.pop %v363
    %v380 = vrsqrt.pop %v364
    %v381 = vrsqrt.pop %v365
    %v382 = vrsqrt.pop %v366
    %v383 = vrsqrt.pop %v367
    %v384 = vrsqrt.pop %v368
    %v385 = vrsqrt.pop %v369
    %v386 = vrsqrt.pop %v370
    %v387 = vrsqrt.pop %v371
    %v388 = vrsqrt.pop %v372
    %v389 = vrsqrt.pop %v373
    %v390 = vrsqrt.pop %v374
    %v391 = vrsqrt.pop %v375
    %v392 = vrsqrt.pop %v376
    %v393 = vmul.f32 %v200, %v377
    %v394 = vmul.f32 %v224, %v378
    %v395 = vmul.f32 %v207, %v379
    %v396 = vmul.f32 %v225, %v380
    %v397 = vmul.f32 %v216, %v381
    %v398 = vmul.f32 %v226, %v382
    %v399 = vmul.f32 %v223, %v383
    %v400 = vmul.f32 %v227, %v384
    %v401 = vmul.f32 %v268, %v385
    %v402 = vmul.f32 %v292, %v386
    %v403 = vmul.f32 %v275, %v387
    %v404 = vmul.f32 %v293, %v388
    %v405 = vmul.f32 %v284, %v389
    %v406 = vmul.f32 %v294, %v390
    %v407 = vmul.f32 %v291, %v391
    %v408 = vmul.f32 %v295, %v392
    %v409 = vcombine.low %v393, %v395
    %v411 = vunpack.c.l.s4 1983009808
    %v412 = vunpack.c.0.s8 %v411
    %v413 = vlaneseq
    %v414 = vshrl.u32 %v413, 7
    %v415 = vsub.s32 %v412, %v414
    %v416 = vrot.slane %v409, %v415
    %v417 = vcombine.low %v394, %v396
    %v419 = vunpack.c.l.s4 1983009808
    %v420 = vunpack.c.0.s8 %v419
    %v421 = vlaneseq
    %v422 = vshrl.u32 %v421, 7
    %v423 = vsub.s32 %v420, %v422
    %v424 = vrot.slane %v417, %v423
    %v425 = vcombine.low %v397, %v399
    %v427 = vunpack.c.l.s4 1983009808
    %v428 = vunpack.c.0.s8 %v427
    %v429 = vlaneseq
    %v430 = vshrl.u32 %v429, 7
    %v431 = vsub.s32 %v428, %v430
    %v432 = vrot.slane %v425, %v431
    %v433 = vcombine.low %v398, %v400
    %v435 = vunpack.c.l.s4 1983009808
    %v436 = vunpack.c.0.s8 %v435
    %v437 = vlaneseq
    %v438 = vshrl.u32 %v437, 7
    %v439 = vsub.s32 %v436, %v438
    %v440 = vrot.slane %v433, %v439
    %v441 = vcombine.low %v416, %v424
    %v442 = vcombine.high %v416, %v424
    %v444 = vunpack.c.l.s4 1934713408
    %v445 = vunpack.c.0.s8 %v444
    %v446 = vlaneseq
    %v447 = vshrl.u32 %v446, 7
    %v448 = vsub.s32 %v445, %v447
    %v449 = vrot.slane %v441, %v448
    %v451 = vunpack.c.l.s4 1934713408
    %v452 = vunpack.c.0.s8 %v451
    %v453 = vlaneseq
    %v454 = vshrl.u32 %v453, 7
    %v455 = vsub.s32 %v452, %v454
    %v456 = vrot.slane %v442, %v455
    %v457 = vcombine.low %v432, %v440
    %v458 = vcombine.high %v432, %v440
    %v460 = vunpack.c.l.s4 1934713408
    %v461 = vunpack.c.0.s8 %v460
    %v462 = vlaneseq
    %v463 = vshrl.u32 %v462, 7
    %v464 = vsub.s32 %v461, %v463
    %v465 = vrot.slane %v457, %v464
    %v467 = vunpack.c.l.s4 1934713408
    %v468 = vunpack.c.0.s8 %v467
    %v469 = vlaneseq
    %v470 = vshrl.u32 %v469, 7
    %v471 = vsub.s32 %v468, %v470
    %v472 = vrot.slane %v458, %v471
    %v473 = vcombine.low %v449, %v465
    %v474 = vcombine.high %v449, %v465
    %v475 = vcombine.low %v456, %v472
    %v476 = vcombine.high %v456, %v472
    %v477 = vcombine.low %v401, %v403
    %v479 = vunpack.c.l.s4 1983009808
    %v480 = vunpack.c.0.s8 %v479
    %v481 = vlaneseq
    %v482 = vshrl.u32 %v481, 7
    %v483 = vsub.s32 %v480, %v482
    %v484 = vrot.slane %v477, %v483
    %v485 = vcombine.low %v402, %v404
    %v487 = vunpack.c.l.s4 1983009808
    %v488 = vunpack.c.0.s8 %v487
    %v489 = vlaneseq
    %v490 = vshrl.u32 %v489, 7
    %v491 = vsub.s32 %v488, %v490
    %v492 = vrot.slane %v485, %v491
    %v493 = vcombine.low %v405, %v407
    %v495 = vunpack.c.l.s4 1983009808
    %v496 = vunpack.c.0.s8 %v495
    %v497 = vlaneseq
    %v498 = vshrl.u32 %v497, 7
    %v499 = vsub.s32 %v496, %v498
    %v500 = vrot.slane %v493, %v499
    %v501 = vcombine.low %v406, %v408
    %v503 = vunpack.c.l.s4 1983009808
    %v504 = vunpack.c.0.s8 %v503
    %v505 = vlaneseq
    %v506 = vshrl.u32 %v505, 7
    %v507 = vsub.s32 %v504, %v506
    %v508 = vrot.slane %v501, %v507
    %v509 = vcombine.low %v484, %v492
    %v510 = vcombine.high %v484, %v492
    %v512 = vunpack.c.l.s4 1934713408
    %v513 = vunpack.c.0.s8 %v512
    %v514 = vlaneseq
    %v515 = vshrl.u32 %v514, 7
    %v516 = vsub.s32 %v513, %v515
    %v517 = vrot.slane %v509, %v516
    %v519 = vunpack.c.l.s4 1934713408
    %v520 = vunpack.c.0.s8 %v519
    %v521 = vlaneseq
    %v522 = vshrl.u32 %v521, 7
    %v523 = vsub.s32 %v520, %v522
    %v524 = vrot.slane %v510, %v523
    %v525 = vcombine.low %v500, %v508
    %v526 = vcombine.high %v500, %v508
    %v528 = vunpack.c.l.s4 1934713408
    %v529 = vunpack.c.0.s8 %v528
    %v530 = vlaneseq
    %v531 = vshrl.u32 %v530, 7
    %v532 = vsub.s32 %v529, %v531
    %v533 = vrot.slane %v525, %v532
    %v535 = vunpack.c.l.s4 1934713408
    %v536 = vunpack.c.0.s8 %v535
    %v537 = vlaneseq
    %v538 = vshrl.u32 %v537, 7
    %v539 = vsub.s32 %v536, %v538
    %v540 = vrot.slane %v526, %v539
    %v541 = vcombine.low %v517, %v533
    %v542 = vcombine.high %v517, %v533
    %v543 = vcombine.low %v524, %v540
    %v544 = vcombine.high %v524, %v540
    %547 = vrot.lane.b32.xlu0 %v474, 8
    %v548 = vpop.permute.xlu0 %547
    %549 = vrot.lane.b32.xlu0 %v542, 8
    %v550 = vpop.permute.xlu0 %549
    %555 = vrot.lane.b32.xlu0 %v475, 16
    %v556 = vpop.permute.xlu0 %555
    %557 = vrot.lane.b32.xlu0 %v543, 16
    %v558 = vpop.permute.xlu0 %557
    %563 = vrot.lane.b32.xlu0 %v476, 24
    %v564 = vpop.permute.xlu0 %563
    %565 = vrot.lane.b32.xlu0 %v544, 24
    %v566 = vpop.permute.xlu0 %565
    %vm569 = vcmask 64512
    %v570 = vsel %vm569, %v473, %v548
    %v571 = vsel %vm569, %v541, %v550
    %vm572 = vcmask 130048
    %v573 = vsel %vm572, %v570, %v556
    %v574 = vsel %vm572, %v571, %v558
    %vm575 = vcmask 195584
    %v576 = vsel %vm575, %v573, %v564
    %v577 = vsel %vm575, %v574, %v566
    %s578 = smul.u32 0, 16
    %v579 = vlaneseq
    %v580 = vshrl.u32 %v579, 7
    %v581 = vadd.s32 %v580, 8
    %v582 = vstv %s578
    %v583 = vadd.s32 %v582, %v580
    %v584 = vadd.s32 %v582, %v581
    %vm585 = vcmp.lt.s32.totalorder %v583, 8
    %vm586 = vcmp.lt.s32.totalorder %v584, 8
    %v587 = vsel %vm585, %v576, 0.0
    %v588 = vsel %vm586, %v577, 0.0
    %589 = vst.msk [vmem:[#allocation7] sm:$0xff] %vm56, %v587
    %590 = vst.msk [vmem:[#allocation7 + $0x8] sm:$0xff] %vm56, %v588
    // Predicated region
    $region22: #{tpu_custom_call.1} parent=1 // pred_check
      _
    $region23: #{tpu_custom_call.1} parent=1 // pred_check_branch
      %592 = sbr.rel (0) target = $region25
    $region24: #{tpu_custom_call.1} parent=1 // pred_region
      %s594 = ssub.s32 256, 256
      %595 = vsyncadd [#allocation4], %s594
      %s596 = sshll.u32 [#allocation7], 4
      %s597 = int_to_ptr.vmem [resolvable:$true] %s596
      %602 = dma.vmem_to_hbm [thread:$0]  %s597, 256, %s3, [#allocation4], 128, 128, 8
    $region25: #{tpu_custom_call.1} parent=1 // pred_fallthru
      _
    // Predicated region
    $region26: #{tpu_custom_call.1} parent=1 // pred_check
      _
    $region27: #{tpu_custom_call.1} parent=1 // pred_check_branch
      %604 = sbr.rel (0) target = $region29
    $region28: #{tpu_custom_call.1} parent=1 // pred_region
      %605 = dma.done [#allocation4], 256
    $region29: #{tpu_custom_call.1} parent=1 // pred_fallthru
      _
    %606 = vsyncpa [#allocation3], 1
    %607 = vsyncpa [#allocation6], 1
    %608 = vsyncpa [#allocation4], 1

</llo_original>
